<compile_context>
chip_gen: v7x
topology: tpu7x:2x2x1
jax: 0.10.0
libtpu: 0.0.40
codegen_flags: <defaults>
</compile_context>

<pallas_src>
import jax
import jax.numpy as jnp
from jax.experimental import pallas as pl
from jax.experimental.pallas import tpu as pltpu


def _round_up(x: int, m: int) -> int:
    return ((x + m - 1) // m) * m


def _cdiv(a: int, b: int) -> int:
    return (a + b - 1) // b


def _pick_tile(padded: int, gran: int, cap: int) -> int:
    """Largest divisor of `padded` that is a multiple of `gran` and <= cap."""
    best = gran
    d = gran
    limit = min(cap, padded)
    while d <= limit:
        if padded % d == 0:
            best = d
        d += gran
    return best


def _vmem_capacity_bytes() -> int:
    try:
        return int(pltpu.get_tpu_info().vmem_capacity_bytes)
    except Exception:
        return 64 * 1024 * 1024  # conservative fallback (v7x per-TC VMEM)


def _matmul_kernel_direct(x1_ref, x2_ref, o_ref):
    # out dtype == accumulation dtype (f32 / i32): accumulate straight into the
    # resident output block — no scratch, no final cast/copy pass.
    k = pl.program_id(3)

    @pl.when(k == 0)
    def _():
        o_ref[...] = jnp.zeros_like(o_ref)

    o_ref[...] += jnp.einsum(
        "bmk,bkn->bmn",
        x1_ref[...],
        x2_ref[...],
        preferred_element_type=o_ref.dtype,
    )


def _matmul_kernel_acc(x1_ref, x2_ref, o_ref, acc_ref):
    # Narrow output dtype (bf16/f16/int8...): accumulate in a wide scratch,
    # cast+store once on the last k step.
    k = pl.program_id(3)

    @pl.when(k == 0)
    def _():
        acc_ref[...] = jnp.zeros_like(acc_ref)

    acc_ref[...] += jnp.einsum(
        "bmk,bkn->bmn",
        x1_ref[...],
        x2_ref[...],
        preferred_element_type=acc_ref.dtype,
    )

    @pl.when(k == pl.num_programs(3) - 1)
    def _():
        o_ref[...] = acc_ref[...].astype(o_ref.dtype)


def pallas_matmul(x1: jax.Array, x2: jax.Array) -> jax.Array:
    """Batched matmul equivalent to `x1 @ x2` (equal leading batch dims)."""
    assert x1.ndim >= 2 and x2.ndim >= 2, "need at least 2-D operands"
    assert x1.shape[:-2] == x2.shape[:-2], "leading batch dims must match"
    assert x1.shape[-1] == x2.shape[-2], "inner contraction dims must match"

    batch_shape = x1.shape[:-2]
    M, K = x1.shape[-2:]
    N = x2.shape[-1]
    B = 1
    for d in batch_shape:
        B *= d

    out_dtype = jnp.promote_types(x1.dtype, x2.dtype)
    if out_dtype == jnp.float64:
        # TODO(synk): TPU has no native f64 path — compute/store in f32.
        out_dtype = jnp.dtype(jnp.float32)
    if jnp.issubdtype(out_dtype, jnp.integer):
        # TODO(synk): v7x MXU has no integer path; int inputs may lower slowly.
        acc_dtype = jnp.dtype(jnp.int32)
        compute_dtype = out_dtype
    else:
        acc_dtype = jnp.dtype(jnp.float32)
        compute_dtype = out_dtype

    direct = jnp.dtype(out_dtype) == acc_dtype  # accumulate into o_ref directly

    in_isz = jnp.dtype(compute_dtype).itemsize
    out_isz = jnp.dtype(out_dtype).itemsize

    # ---- generation-aware VMEM sizing ------------------------------------
    vmem_cap = _vmem_capacity_bytes()
    if vmem_cap >= 96 * 1024 * 1024:      # v5e / v6e: 128 MiB VMEM
        tm_cap = tn_cap = 512
        vmem_budget = 64 * 1024 * 1024
        vmem_limit = 96 * 1024 * 1024
        small_vmem_chip = False
    else:                                  # v7x: 64 MiB per TensorCore
        tm_cap = tn_cap = 256
        vmem_budget = 30 * 1024 * 1024
        vmem_limit = 44 * 1024 * 1024
        small_vmem_chip = True             # also has 2 TCs / chip

    # ---- pad to hardware granularity only, then tile with divisors -------
    m_gran = 8 * max(1, 4 // in_isz)       # 8 (f32), 16 (bf16), 32 (int8/fp8)
    Mp = _round_up(M, m_gran)
    Np = _round_up(N, 128)
    Kp = _round_up(K, 128)

    tm = _pick_tile(Mp, m_gran, tm_cap)
    tn = _pick_tile(Np, 128, tn_cap)

    # tk: as large as the VMEM budget allows with bb=1 (fewer reduction steps,
    # fewer pipeline steps, fewer accumulator passes).
    fixed_bytes = 2 * tm * tn * out_isz + (0 if direct else tm * tn * 4)
    tk_fit = (vmem_budget - fixed_bytes) // (2 * (tm + tn) * in_isz)
    tk_cap = max(128, min(2048, (tk_fit // 128) * 128))
    tk = _pick_tile(Kp, 128, tk_cap)

    # ---- batch blocking: fold bb batch elements per grid step ------------
    acc_bytes_per_b = 0 if direct else tm * tn * 4
    per_b_bytes = (
        (tm * tk + tk * tn) * in_isz * 2   # double-buffered input tiles
        + tm * tn * out_isz * 2            # double-buffered output tile
        + acc_bytes_per_b                  # accumulator (scratch path only)
    )
    bb_max = int(max(1, min(B, vmem_budget // per_b_bytes)))
    nblocks = _cdiv(B, bb_max)
    bb = _cdiv(B, nblocks)                 # balance so batch padding < one block

    # v7x has 2 TensorCores/chip: make sure at least one parallel grid axis
    # has extent >= 2 when the problem otherwise collapses to a single tile.
    if (small_vmem_chip and nblocks == 1 and Mp == tm and Np == tn and B >= 2):
        nblocks = 2
        bb = _cdiv(B, 2)

    Bp = nblocks * bb

    # ---- flatten batch + pad (zero padding is exact for matmul) ----------
    x1f = x1.astype(compute_dtype).reshape(B, M, K)
    x2f = x2.astype(compute_dtype).reshape(B, K, N)
    if (Bp, Mp, Kp) != (B, M, K):
        x1f = jnp.pad(x1f, ((0, Bp - B), (0, Mp - M), (0, Kp - K)))
    if (Bp, Kp, Np) != (B, K, N):
        x2f = jnp.pad(x2f, ((0, Bp - B), (0, Kp - K), (0, Np - N)))

    grid = (Bp // bb, Mp // tm, Np // tn, Kp // tk)

    if direct:
        kernel = _matmul_kernel_direct
        scratch_shapes = []
    else:
        kernel = _matmul_kernel_acc
        scratch_shapes = [pltpu.VMEM((bb, tm, tn), acc_dtype)]

    cost = pl.CostEstimate(
        flops=2 * B * M * N * K,
        transcendentals=0,
        bytes_accessed=(B * M * K + B * K * N) * in_isz + B * M * N * out_isz,
    )

    out = pl.pallas_call(
        kernel,
        out_shape=jax.ShapeDtypeStruct((Bp, Mp, Np), out_dtype),
        grid_spec=pltpu.PrefetchScalarGridSpec(
            num_scalar_prefetch=0,
            grid=grid,
            in_specs=[
                pl.BlockSpec((bb, tm, tk), lambda b, i, j, k: (b, i, k)),
                pl.BlockSpec((bb, tk, tn), lambda b, i, j, k: (b, k, j)),
            ],
            out_specs=pl.BlockSpec((bb, tm, tn), lambda b, i, j, k: (b, i, j)),
            scratch_shapes=scratch_shapes,
        ),
        compiler_params=pltpu.CompilerParams(
            dimension_semantics=("parallel", "parallel", "parallel", "arbitrary"),
            vmem_limit_bytes=vmem_limit,
        ),
        cost_estimate=cost,
    )(x1f, x2f)

    # Slice away padding, restore original batch shape.
    out = out[:B, :M, :N]
    return out.reshape(*batch_shape, M, N)


if __name__ == "__main__":
    key = jax.random.PRNGKey(0)
    k1, k2 = jax.random.split(key)

    # Attention-score-style shapes: (B, H, seq, head_dim) @ (B, H, head_dim, seq)
    B, H, S, D = 2, 4, 8, 32
    x1 = jax.random.normal(k1, (B, H, S, D), dtype=jnp.float32)
    x2 = jax.random.normal(k2, (B, H, D, S), dtype=jnp.float32)

    out = pallas_matmul(x1, x2)
    jax.block_until_ready(out)
    ref = jnp.matmul(x1, x2)
    assert out.shape == (B, H, S, S)
    assert jnp.allclose(out, ref, atol=1e-4, rtol=1e-4)

    # Larger, non-tile-aligned case: exercises the padded / multi-tile path.
    y1 = jax.random.normal(k1, (3, 100, 200), dtype=jnp.float32)
    y2 = jax.random.normal(k2, (3, 200, 150), dtype=jnp.float32)
    out2 = pallas_matmul(y1, y2)
    jax.block_until_ready(out2)
    ref2 = jnp.matmul(y1, y2)
    assert jnp.allclose(out2, ref2, atol=1e-3, rtol=1e-3)

    # bf16 case: exercises the f32-scratch-accumulator (non-direct) path.
    z1 = jax.random.normal(k1, (2, 64, 96), dtype=jnp.float32).astype(jnp.bfloat16)
    z2 = jax.random.normal(k2, (2, 96, 80), dtype=jnp.float32).astype(jnp.bfloat16)
    out3 = pallas_matmul(z1, z2)
    jax.block_until_ready(out3)
    ref3 = jnp.matmul(z1, z2)
    assert out3.dtype == jnp.bfloat16
    assert jnp.allclose(out3.astype(jnp.float32), ref3.astype(jnp.float32),
                        atol=2e-1, rtol=5e-2)

    print("KERNEL_OK")
</pallas_src>

<mosaic_0001>
module attributes {stable_mosaic.version = 11 : i64} {
  func.func @_matmul_kernel_direct(%arg0: i32, %arg1: i32, %arg2: i32, %arg3: i32, %arg4: memref<4x8x128xf32, #tpu.memory_space<vmem>>, %arg5: memref<4x128x128xf32, #tpu.memory_space<vmem>>, %arg6: memref<4x8x128xf32, #tpu.memory_space<vmem>>) attributes {dimension_semantics = [#tpu.dimension_semantics<parallel>, #tpu.dimension_semantics<parallel>, #tpu.dimension_semantics<parallel>, #tpu.dimension_semantics<arbitrary>], iteration_bounds = array<i64: 2, 1, 1, 1>, scalar_prefetch = 0 : i64, scratch_operands = 0 : i64, tpu.core_type = #tpu.core_type<tc>, window_params = [{transform_indices = @transform_0, window_bounds = array<i64: 4, 8, 128>}, {transform_indices = @transform_1, window_bounds = array<i64: 4, 128, 128>}, {transform_indices = @transform_2, window_bounds = array<i64: 4, 8, 128>}]} {
    %c0_i32 = arith.constant 0 : i32
    %0 = arith.cmpi eq, %arg3, %c0_i32 : i32
    %1 = arith.extui %0 : i1 to i32
    %c0_i32_0 = arith.constant 0 : i32
    %2 = arith.cmpi ne, %1, %c0_i32_0 : i32
    scf.if %2 {
      %cst_12 = arith.constant 0.000000e+00 : f32
      %9 = vector.broadcast %cst_12 : f32 to vector<4x8x128xf32>
      %c0_13 = arith.constant 0 : index
      %c0_14 = arith.constant 0 : index
      %c0_15 = arith.constant 0 : index
      %10 = vector.load %arg6[%c0_13, %c0_14, %c0_15] : memref<4x8x128xf32, #tpu.memory_space<vmem>>, vector<4x8x128xf32>
      tpu.vector_store %arg6[%c0_13, %c0_14, %c0_15], %9 {strides = array<i32>} : memref<4x8x128xf32, #tpu.memory_space<vmem>>, vector<4x8x128xf32>,
    } else {
    }
    %c0 = arith.constant 0 : index
    %c0_1 = arith.constant 0 : index
    %c0_2 = arith.constant 0 : index
    %3 = vector.load %arg6[%c0, %c0_1, %c0_2] : memref<4x8x128xf32, #tpu.memory_space<vmem>>, vector<4x8x128xf32>
    %c0_3 = arith.constant 0 : index
    %c0_4 = arith.constant 0 : index
    %c0_5 = arith.constant 0 : index
    %4 = vector.load %arg4[%c0_3, %c0_4, %c0_5] : memref<4x8x128xf32, #tpu.memory_space<vmem>>, vector<4x8x128xf32>
    %c0_6 = arith.constant 0 : index
    %c0_7 = arith.constant 0 : index
    %c0_8 = arith.constant 0 : index
    %5 = vector.load %arg5[%c0_6, %c0_7, %c0_8] : memref<4x128x128xf32, #tpu.memory_space<vmem>>, vector<4x128x128xf32>
    "tpu.trace_start"() <{level = 10 : i32, message = "bmk,bkn->bmn"}> : () -> ()
    %cst = arith.constant dense<0.000000e+00> : vector<4x8x128xf32>
    %6 = tpu.matmul %4, %5, %cst {dimension_numbers = #tpu.dot_dimension_numbers<[2], [1], [1], [2], [0, 0, 0, 1, 1, 2], [0], [0]>} : vector<4x8x128xf32>, vector<4x128x128xf32>, vector<4x8x128xf32> -> vector<4x8x128xf32>
    "tpu.trace_stop"() : () -> ()
    %7 = arith.addf %3, %6 : vector<4x8x128xf32>
    %c0_9 = arith.constant 0 : index
    %c0_10 = arith.constant 0 : index
    %c0_11 = arith.constant 0 : index
    %8 = vector.load %arg6[%c0_9, %c0_10, %c0_11] : memref<4x8x128xf32, #tpu.memory_space<vmem>>, vector<4x8x128xf32>
    tpu.vector_store %arg6[%c0_9, %c0_10, %c0_11], %7 {strides = array<i32>} : memref<4x8x128xf32, #tpu.memory_space<vmem>>, vector<4x8x128xf32>,
    return
  }
  func.func @transform_0(%arg0: i32, %arg1: i32, %arg2: i32, %arg3: i32) -> (i32, i32, i32) {
    %c0_i32 = arith.constant 0 : i32
    return %arg0, %arg1, %arg3 : i32, i32, i32
  }
  func.func @transform_1(%arg0: i32, %arg1: i32, %arg2: i32, %arg3: i32) -> (i32, i32, i32) {
    %c0_i32 = arith.constant 0 : i32
    return %arg0, %arg3, %arg2 : i32, i32, i32
  }
  func.func @transform_2(%arg0: i32, %arg1: i32, %arg2: i32, %arg3: i32) -> (i32, i32, i32) {
    %c0_i32 = arith.constant 0 : i32
    return %arg0, %arg1, %arg2 : i32, i32, i32
  }
}

</mosaic_0001>

<llo_original>
// kernel: tpu_custom_call.1
$region0: #{tpu_custom_call.1}
  #allocation0 [shape = 'u32[]', space=smem, size = 0x4, offset = 0x4, fixed_abs, tag = 'smem constant byte address 0x4 - core index']
  #allocation1 [shape = 'u32[144,128]{1,0:T(1,128)}', space=vmem, size = 0x12000, scoped, tag = 'internal scratch']
  %s0 = inlined_call_operand.hbm [shape: f32[8,8,128], index: 0, kind: input, shape index: {}]
  %s1 = inlined_call_operand.hbm [shape: f32[8,128,128], index: 1, kind: input, shape index: {}]
  %s2 = inlined_call_operand.hbm [shape: f32[8,8,128], index: 2, kind: output, shape index: {}]
  %s3 = sld [smem:[#allocation0]]
  $region53: #{tpu_custom_call.1} parent=0
    _
  %s5 = ssub.s32 1, %s3
  %s6 = scalar_select 0, %s5, %s3
  $region1: #{tpu_custom_call.1} parent=0
    #allocation2 [shape = 'u8[32768]{0}', space=vmem, size = 0x8000, scoped, tag = 'input window, operand 0']
    #allocation3 [shape = 's32[2]{0}', space=sflag, size = 0x8, scoped, tag = 'scoped memory for tpu_custom_call.1']
    #allocation4 [shape = 's32[2]{0}', space=sflag, size = 0x8, scoped, tag = 'scoped memory for tpu_custom_call.1']
    #allocation5 [shape = 'u8[524288]{0}', space=vmem, size = 0x80000, scoped, tag = 'input window, operand 1']
    #allocation6 [shape = 's32[2]{0}', space=sflag, size = 0x8, scoped, tag = 'scoped memory for tpu_custom_call.1']
    #allocation7 [shape = 'u8[32768]{0}', space=vmem, size = 0x8000, scoped, tag = 'output window, operand 0']
    %7 = vsyncpa [#allocation3], 0
    %s8 = scalar_lea.sflag [#allocation3], 1
    %9 = vsyncpa %s8, 0
    %10 = vsyncpa [#allocation6], 0
    %s11 = scalar_lea.sflag [#allocation6], 1
    %12 = vsyncpa %s11, 0
    %13 = vsyncpa [#allocation4], 0
    %s14 = scalar_lea.sflag [#allocation4], 1
    %15 = vsyncpa %s14, 0
    loop: start=0, step=1, limit=4
    $region2: #{tpu_custom_call.1} parent=1 // loop_pre_header
      _
    $region3: #{tpu_custom_call.1} parent=1 // loop_header
      %s17 = sphi 0, %s21
      %p18 = scmp.ge.s32.totalorder %s17, 4
      %s24 = sphi 0, %s50
      %s25 = sphi 0, %s46
      %s26 = sphi 0, %s42
      %s27 = sphi 0, %s38
      %s28 = sphi 0, %s24
      %s29 = sphi 0, %s25
      %s30 = sphi 0, %s26
      %s31 = sphi 0, %s27
      %s32 = sphi 0, %s28
      %s33 = sphi 0, %s29
      %s34 = sphi 0, %s30
      %s35 = sphi 0, %s31
      %s57 = sphi 0, %s59
      %s60 = sphi 0, %s57
      %s61 = sphi 0, %s60
      %s77 = sphi 0, %s61
      %s87 = sphi 0, %s89
      %s90 = sphi 0, %s87
      %s91 = sphi 0, %s90
      %s107 = sphi 0, %s91
      %s117 = sphi 0, %s119
      %s120 = sphi 0, %s117
      %s121 = sphi 0, %s120
      %s137 = sphi 0, %s121
    $region4: #{tpu_custom_call.1} parent=1 // loop_header_branch
      %20 = sbr.rel (%p18) target = $region8
    $region5: #{tpu_custom_call.1} parent=1 // loop_body
      %s22 = ssub.s32 %s17, 1
      %s23 = ssub.s32 %s17, 2
      %s36 = sadd.s32 1, %s27
      %p37 = scmp.ge.s32.totalorder %s36, 1
      %s38 = scalar_select %p37, 0, %s36
      %s39 = sadd.s32 1, %s26
      %s40 = scalar_select %p37, %s39, %s26
      %p41 = scmp.ge.s32.totalorder %s40, 1
      %s42 = scalar_select %p41, 0, %s40
      %s43 = sadd.s32 1, %s25
      %s44 = scalar_select %p41, %s43, %s25
      %p45 = scmp.ge.s32.totalorder %s44, 1
      %s46 = scalar_select %p45, 0, %s44
      %s47 = sadd.s32 1, %s24
      %s48 = scalar_select %p45, %s47, %s24
      %p49 = scmp.ge.s32.totalorder %s48, 2
      %s50 = scalar_select %p49, 0, %s48
      %s51 = ssub.s32 %s24, %s50
      %s52 = ssub.s32 %s25, %s46
      %s53 = sor.u32 %s51, %s52
      %s54 = ssub.s32 %s27, %s38
      %s55 = sor.u32 %s53, %s54
      %p56 = scmp.eq.s32.totalorder %s55, 0
      %s58 = sadd.s32 %s57, 1
      %s59 = scalar_select %p56, %s57, %s58
      %p62 = pneg %p56
      %p63 = scmp.eq.s32.totalorder %s17, 1
      %p64 = por %p62, %p63
      %p65 = scmp.ne.s32.totalorder %s57, %s60
      %p66 = scmp.eq.s32.totalorder %s17, 0
      %p67 = por %p65, %p66
      %p68 = scmp.ne.s32.totalorder %s57, %s60
      %p69 = scmp.eq.s32.totalorder %s22, 1
      %p70 = por %p68, %p69
      %p71 = scmp.ne.s32.totalorder %s60, %s61
      %p72 = scmp.eq.s32.totalorder %s22, 0
      %p73 = por %p71, %p72
      %p74 = scmp.ne.s32.totalorder %s60, %s61
      %p75 = scmp.eq.s32.totalorder %s23, 1
      %p76 = por %p74, %p75
      %p78 = scmp.ne.s32.totalorder %s61, %s77
      %p79 = scmp.eq.s32.totalorder %s23, 0
      %p80 = por %p78, %p79
      %s81 = ssub.s32 %s24, %s50
      %s82 = ssub.s32 %s27, %s38
      %s83 = sor.u32 %s81, %s82
      %s84 = ssub.s32 %s26, %s42
      %s85 = sor.u32 %s83, %s84
      %p86 = scmp.eq.s32.totalorder %s85, 0
      %s88 = sadd.s32 %s87, 1
      %s89 = scalar_select %p86, %s87, %s88
      %p92 = pneg %p86
      %p93 = scmp.eq.s32.totalorder %s17, 1
      %p94 = por %p92, %p93
      %p95 = scmp.ne.s32.totalorder %s87, %s90
      %p96 = scmp.eq.s32.totalorder %s17, 0
      %p97 = por %p95, %p96
      %p98 = scmp.ne.s32.totalorder %s87, %s90
      %p99 = scmp.eq.s32.totalorder %s22, 1
      %p100 = por %p98, %p99
      %p101 = scmp.ne.s32.totalorder %s90, %s91
      %p102 = scmp.eq.s32.totalorder %s22, 0
      %p103 = por %p101, %p102
      %p104 = scmp.ne.s32.totalorder %s90, %s91
      %p105 = scmp.eq.s32.totalorder %s23, 1
      %p106 = por %p104, %p105
      %p108 = scmp.ne.s32.totalorder %s91, %s107
      %p109 = scmp.eq.s32.totalorder %s23, 0
      %p110 = por %p108, %p109
      %s111 = ssub.s32 %s24, %s50
      %s112 = ssub.s32 %s25, %s46
      %s113 = sor.u32 %s111, %s112
      %s114 = ssub.s32 %s26, %s42
      %s115 = sor.u32 %s113, %s114
      %p116 = scmp.eq.s32.totalorder %s115, 0
      %s118 = sadd.s32 %s117, 1
      %s119 = scalar_select %p116, %s117, %s118
      %p122 = pneg %p116
      %p123 = scmp.eq.s32.totalorder %s17, 1
      %p124 = por %p122, %p123
      %p125 = scmp.ne.s32.totalorder %s117, %s120
      %p126 = scmp.eq.s32.totalorder %s17, 0
      %p127 = por %p125, %p126
      %p128 = scmp.ne.s32.totalorder %s117, %s120
      %p129 = scmp.eq.s32.totalorder %s22, 1
      %p130 = por %p128, %p129
      %p131 = scmp.ne.s32.totalorder %s120, %s121
      %p132 = scmp.eq.s32.totalorder %s22, 0
      %p133 = por %p131, %p132
      %p134 = scmp.ne.s32.totalorder %s120, %s121
      %p135 = scmp.eq.s32.totalorder %s23, 1
      %p136 = por %p134, %p135
      %p138 = scmp.ne.s32.totalorder %s121, %s137
      %p139 = scmp.eq.s32.totalorder %s23, 0
      %p140 = por %p138, %p139
      %p141 = scmp.le.s32.totalorder 1, %s17
      %p142 = scmp.lt.s32.totalorder %s17, 3
      %p143 = pnand %p141, %p142
      %p144 = pneg %p143
      // Predicated region
      $region9: #{tpu_custom_call.1} parent=5 // pred_check
        _
      $region10: #{tpu_custom_call.1} parent=5 // pred_check_branch
        %146 = sbr.rel (%p143) target = $region12
      $region11: #{tpu_custom_call.1} parent=5 // pred_region
        %s147 = ssub.s32 %s17, 1
      $region12: #{tpu_custom_call.1} parent=5 // pred_fallthru
        _
      %p148 = scmp.lt.s32.totalorder %s17, 2
      // Predicated region
      $region13: #{tpu_custom_call.1} parent=5 // pred_check
        %p149 = pneg %p148
      $region14: #{tpu_custom_call.1} parent=5 // pred_check_branch
        %151 = sbr.rel (%p149) target = $region16
      $region15: #{tpu_custom_call.1} parent=5 // pred_region
        // Predicated region
        $region17: #{tpu_custom_call.1} parent=15 // pred_check
          %p152 = pneg %p67
        $region18: #{tpu_custom_call.1} parent=15 // pred_check_branch
          %154 = sbr.rel (%p152) target = $region20
        $region19: #{tpu_custom_call.1} parent=15 // pred_region
          %s155 = sand.u32 %s57, 1
          %s156 = scalar_lea.sflag [#allocation3], %s155
          %s157 = sand.u32 %s57, 1
          %s158 = smul.addr %s157, 32
          %s159 = scalar_lea.vmem [#allocation2], %s158
          %s160 = smul.u32 4, %s24
          %s162 = ssub.s32 512, 512
          %163 = vsyncadd %s156, %s162
          %s164 = sadd.s32 %s27, %s25
          %s165 = sadd.s32 %s164, %s160
          %s166 = smul.addr %s165, 128
          %s167 = scalar_lea.hbm %s0, %s166
          %s168 = sshll.u32 %s159, 4
          %s169 = int_to_ptr.vmem [resolvable:$true] %s168
          %174 = dma.hbm_to_vmem [thread:$0]  %s167, 512, %s169, %s156, 128, 128, 8
        $region20: #{tpu_custom_call.1} parent=15 // pred_fallthru
          _
        // Predicated region
        $region21: #{tpu_custom_call.1} parent=15 // pred_check
          %p175 = pneg %p97
        $region22: #{tpu_custom_call.1} parent=15 // pred_check_branch
          %177 = sbr.rel (%p175) target = $region24
        $region23: #{tpu_custom_call.1} parent=15 // pred_region
          %s178 = sand.u32 %s87, 1
          %s179 = scalar_lea.sflag [#allocation6], %s178
          %s180 = sand.u32 %s87, 1
          %s181 = smul.addr %s180, 512
          %s182 = scalar_lea.vmem [#allocation5], %s181
          %s183 = smul.u32 4, %s24
          %s184 = smul.u32 16, %s27
          %s186 = ssub.s32 8192, 8192
          %187 = vsyncadd %s179, %s186
          %s188 = sadd.s32 %s26, %s184
          %s189 = smul.addr %s183, 16
          %s190 = sadd.s32 %s188, %s189
          %s191 = smul.addr %s190, 128
          %s192 = scalar_lea.hbm %s1, %s191
          %s193 = sshll.u32 %s182, 4
          %s194 = int_to_ptr.vmem [resolvable:$true] %s193
          %199 = dma.hbm_to_vmem [thread:$0]  %s192, 8192, %s194, %s179, 128, 128, 8
        $region24: #{tpu_custom_call.1} parent=15 // pred_fallthru
          _
      $region16: #{tpu_custom_call.1} parent=5 // pred_fallthru
        _
      %p200 = scmp.le.s32.totalorder 1, %s17
      %p201 = scmp.lt.s32.totalorder %s17, 3
      %p202 = pnand %p200, %p201
      %p203 = pneg %p202
      // Predicated region
      $region25: #{tpu_custom_call.1} parent=5 // pred_check
        _
      $region26: #{tpu_custom_call.1} parent=5 // pred_check_branch
        %205 = sbr.rel (%p202) target = $region28
      $region27: #{tpu_custom_call.1} parent=5 // pred_region
        %s206 = ssub.s32 %s17, 1
        %s207 = sand.u32 %s60, 1
        %s208 = scalar_lea.sflag [#allocation3], %s207
        %s209 = sand.u32 %s60, 1
        %s210 = smul.addr %s209, 32
        %s211 = scalar_lea.vmem [#allocation2], %s210
        // Predicated region
        $region29: #{tpu_custom_call.1} parent=27 // pred_check
          %p212 = pneg %p73
        $region30: #{tpu_custom_call.1} parent=27 // pred_check_branch
          %214 = sbr.rel (%p212) target = $region32
        $region31: #{tpu_custom_call.1} parent=27 // pred_region
          %215 = dma.done %s208, 512
        $region32: #{tpu_custom_call.1} parent=27 // pred_fallthru
          _
        %s216 = sand.u32 %s90, 1
        %s217 = scalar_lea.sflag [#allocation6], %s216
        %s218 = sand.u32 %s90, 1
        %s219 = smul.addr %s218, 512
        %s220 = scalar_lea.vmem [#allocation5], %s219
        // Predicated region
        $region33: #{tpu_custom_call.1} parent=27 // pred_check
          %p221 = pneg %p103
        $region34: #{tpu_custom_call.1} parent=27 // pred_check_branch
          %223 = sbr.rel (%p221) target = $region36
        $region35: #{tpu_custom_call.1} parent=27 // pred_region
          %224 = dma.done %s217, 8192
        $region36: #{tpu_custom_call.1} parent=27 // pred_fallthru
          _
        %s225 = sand.u32 %s60, 1
        %s226 = scalar_lea.sflag [#allocation3], %s225
        %s227 = sand.u32 %s60, 1
        %s228 = smul.addr %s227, 32
        %s229 = scalar_lea.vmem [#allocation2], %s228
        %p230 = pneg %p73
        %p231 = pneg %p70
        %s232 = sand.u32 %s90, 1
        %s233 = scalar_lea.sflag [#allocation6], %s232
        %s234 = sand.u32 %s90, 1
        %s235 = smul.addr %s234, 512
        %s236 = scalar_lea.vmem [#allocation5], %s235
        %p237 = pneg %p103
        %p238 = pneg %p100
        %p239 = pneg %p133
        %p240 = pneg %p130
        %s241 = sand.u32 %s120, 1
        %s242 = scalar_lea.sflag [#allocation4], %s241
        %s243 = sand.u32 %s120, 1
        %s244 = smul.addr %s243, 32
        %s245 = scalar_lea.vmem [#allocation7], %s244
        %s246 = smul.u32 4, %s28
        %s247 = smul.u32 4, %s28
        %s248 = smul.u32 16, %s31
        %s249 = smul.u32 4, %s28
        %p250 = scmp.eq.s32.totalorder %s31, 0
        // Predicated region
        $region37: #{tpu_custom_call.1} parent=27 // pred_check
          %p251 = pneg %p250
        $region38: #{tpu_custom_call.1} parent=27 // pred_check_branch
          %253 = sbr.rel (%p251) target = $region40
        $region39: #{tpu_custom_call.1} parent=27 // pred_region
          %254 = vst [vmem:[%s245] sm:$0xff] 0.0
          %255 = vst [vmem:[%s245 + $0x8] sm:$0xff] 0.0
          %256 = vst [vmem:[%s245 + $0x10] sm:$0xff] 0.0
          %257 = vst [vmem:[%s245 + $0x18] sm:$0xff] 0.0
        $region40: #{tpu_custom_call.1} parent=27 // pred_fallthru
          _
        %v258 = vld [vmem:[%s245] sm:$0xff]
        %v259 = vld [vmem:[%s245 + $0x8] sm:$0xff]
        %v260 = vld [vmem:[%s245 + $0x10] sm:$0xff]
        %v261 = vld [vmem:[%s245 + $0x18] sm:$0xff]
        %v262 = vld [vmem:[%s211] sm:$0xff]
        %v263 = vld [vmem:[%s211 + $0x8] sm:$0xff]
        %v264 = vld [vmem:[%s211 + $0x10] sm:$0xff]
        %v265 = vld [vmem:[%s211 + $0x18] sm:$0xff]
        %v266 = vld [vmem:[%s220] sm:$0xff]
        %v267 = vld [vmem:[%s220 + $0x8] sm:$0xff]
        %v268 = vld [vmem:[%s220 + $0x10] sm:$0xff]
        %v269 = vld [vmem:[%s220 + $0x18] sm:$0xff]
        %v270 = vld [vmem:[%s220 + $0x20] sm:$0xff]
        %v271 = vld [vmem:[%s220 + $0x28] sm:$0xff]
        %v272 = vld [vmem:[%s220 + $0x30] sm:$0xff]
        %v273 = vld [vmem:[%s220 + $0x38] sm:$0xff]
        %v274 = vld [vmem:[%s220 + $0x40] sm:$0xff]
        %v275 = vld [vmem:[%s220 + $0x48] sm:$0xff]
        %v276 = vld [vmem:[%s220 + $0x50] sm:$0xff]
        %v277 = vld [vmem:[%s220 + $0x58] sm:$0xff]
        %v278 = vld [vmem:[%s220 + $0x60] sm:$0xff]
        %v279 = vld [vmem:[%s220 + $0x68] sm:$0xff]
        %v280 = vld [vmem:[%s220 + $0x70] sm:$0xff]
        %v281 = vld [vmem:[%s220 + $0x78] sm:$0xff]
        %v282 = vld [vmem:[%s220 + $0x80] sm:$0xff]
        %v283 = vld [vmem:[%s220 + $0x88] sm:$0xff]
        %v284 = vld [vmem:[%s220 + $0x90] sm:$0xff]
        %v285 = vld [vmem:[%s220 + $0x98] sm:$0xff]
        %v286 = vld [vmem:[%s220 + $0xa0] sm:$0xff]
        %v287 = vld [vmem:[%s220 + $0xa8] sm:$0xff]
        %v288 = vld [vmem:[%s220 + $0xb0] sm:$0xff]
        %v289 = vld [vmem:[%s220 + $0xb8] sm:$0xff]
        %v290 = vld [vmem:[%s220 + $0xc0] sm:$0xff]
        %v291 = vld [vmem:[%s220 + $0xc8] sm:$0xff]
        %v292 = vld [vmem:[%s220 + $0xd0] sm:$0xff]
        %v293 = vld [vmem:[%s220 + $0xd8] sm:$0xff]
        %v294 = vld [vmem:[%s220 + $0xe0] sm:$0xff]
        %v295 = vld [vmem:[%s220 + $0xe8] sm:$0xff]
        %v296 = vld [vmem:[%s220 + $0xf0] sm:$0xff]
        %v297 = vld [vmem:[%s220 + $0xf8] sm:$0xff]
        %v298 = vld [vmem:[%s220 + $0x100] sm:$0xff]
        %v299 = vld [vmem:[%s220 + $0x108] sm:$0xff]
        %v300 = vld [vmem:[%s220 + $0x110] sm:$0xff]
        %v301 = vld [vmem:[%s220 + $0x118] sm:$0xff]
        %v302 = vld [vmem:[%s220 + $0x120] sm:$0xff]
        %v303 = vld [vmem:[%s220 + $0x128] sm:$0xff]
        %v304 = vld [vmem:[%s220 + $0x130] sm:$0xff]
        %v305 = vld [vmem:[%s220 + $0x138] sm:$0xff]
        %v306 = vld [vmem:[%s220 + $0x140] sm:$0xff]
        %v307 = vld [vmem:[%s220 + $0x148] sm:$0xff]
        %v308 = vld [vmem:[%s220 + $0x150] sm:$0xff]
        %v309 = vld [vmem:[%s220 + $0x158] sm:$0xff]
        %v310 = vld [vmem:[%s220 + $0x160] sm:$0xff]
        %v311 = vld [vmem:[%s220 + $0x168] sm:$0xff]
        %v312 = vld [vmem:[%s220 + $0x170] sm:$0xff]
        %v313 = vld [vmem:[%s220 + $0x178] sm:$0xff]
        %v314 = vld [vmem:[%s220 + $0x180] sm:$0xff]
        %v315 = vld [vmem:[%s220 + $0x188] sm:$0xff]
        %v316 = vld [vmem:[%s220 + $0x190] sm:$0xff]
        %v317 = vld [vmem:[%s220 + $0x198] sm:$0xff]
        %v318 = vld [vmem:[%s220 + $0x1a0] sm:$0xff]
        %v319 = vld [vmem:[%s220 + $0x1a8] sm:$0xff]
        %v320 = vld [vmem:[%s220 + $0x1b0] sm:$0xff]
        %v321 = vld [vmem:[%s220 + $0x1b8] sm:$0xff]
        %v322 = vld [vmem:[%s220 + $0x1c0] sm:$0xff]
        %v323 = vld [vmem:[%s220 + $0x1c8] sm:$0xff]
        %v324 = vld [vmem:[%s220 + $0x1d0] sm:$0xff]
        %v325 = vld [vmem:[%s220 + $0x1d8] sm:$0xff]
        %v326 = vld [vmem:[%s220 + $0x1e0] sm:$0xff]
        %v327 = vld [vmem:[%s220 + $0x1e8] sm:$0xff]
        %v328 = vld [vmem:[%s220 + $0x1f0] sm:$0xff]
        %v329 = vld [vmem:[%s220 + $0x1f8] sm:$0xff]
        %330 = vmatprep.subr.mxu0 0.0
        %331 = vmatpush1.msra.mxu0 %v266
        %332 = vmatprep.subr.mxu0 0.0
        %333 = vmatpush1.msra.mxu0 %v267
        %334 = vmatprep.subr.mxu0 0.0
        %335 = vmatpush1.msra.mxu0 %v268
        %336 = vmatprep.subr.mxu0 0.0
        %337 = vmatpush1.msra.mxu0 %v269
        %338 = vmatprep.subr.mxu0 0.0
        %339 = vmatpush1.msra.mxu0 %v270
        %340 = vmatprep.subr.mxu0 0.0
        %341 = vmatpush1.msra.mxu0 %v271
        %342 = vmatprep.subr.mxu0 0.0
        %343 = vmatpush1.msra.mxu0 %v272
        %344 = vmatprep.subr.mxu0 0.0
        %345 = vmatpush1.msra.mxu0 %v273
        %346 = vmatprep.subr.mxu0 0.0
        %347 = vmatpush1.msra.mxu0 %v274
        %348 = vmatprep.subr.mxu0 0.0
        %349 = vmatpush1.msra.mxu0 %v275
        %350 = vmatprep.subr.mxu0 0.0
        %351 = vmatpush1.msra.mxu0 %v276
        %352 = vmatprep.subr.mxu0 0.0
        %353 = vmatpush1.msra.mxu0 %v277
        %354 = vmatprep.subr.mxu0 0.0
        %355 = vmatpush1.msra.mxu0 %v278
        %356 = vmatprep.subr.mxu0 0.0
        %357 = vmatpush1.msra.mxu0 %v279
        %358 = vmatprep.subr.mxu0 0.0
        %359 = vmatpush1.msra.mxu0 %v280
        %360 = vmatprep.subr.mxu0 0.0
        %361 = vmatpush1.msra.mxu0 %v281
        %362 = vmatprep.subr.mxu0 0.0
        %363 = vmatpush1.msra.mxu0 0.0
        %364 = vmatprep.subr.mxu0 0.0
        %365 = vmatpush1.msra.mxu0 0.0
        %366 = vmatprep.subr.mxu0 0.0
        %367 = vmatpush1.msra.mxu0 0.0
        %368 = vmatprep.subr.mxu0 0.0
        %369 = vmatpush1.msra.mxu0 0.0
        %370 = vmatprep.subr.mxu0 0.0
        %371 = vmatpush1.msra.mxu0 0.0
        %372 = vmatprep.subr.mxu0 0.0
        %373 = vmatpush1.msra.mxu0 0.0
        %374 = vmatprep.subr.mxu0 0.0
        %375 = vmatpush1.msra.mxu0 0.0
        %376 = vmatprep.subr.mxu0 0.0
        %377 = vmatpush1.msra.mxu0 0.0
        %378 = vmatprep.subr.mxu0 0.0
        %379 = vmatpush1.msra.mxu0 0.0
        %380 = vmatprep.subr.mxu0 0.0
        %381 = vmatpush1.msra.mxu0 0.0
        %382 = vmatprep.subr.mxu0 0.0
        %383 = vmatpush1.msra.mxu0 0.0
        %384 = vmatprep.subr.mxu0 0.0
        %385 = vmatpush1.msra.mxu0 0.0
        %386 = vmatprep.subr.mxu0 0.0
        %387 = vmatpush1.msra.mxu0 0.0
        %388 = vmatprep.subr.mxu0 0.0
        %389 = vmatpush1.msra.mxu0 0.0
        %390 = vmatprep.subr.mxu0 0.0
        %391 = vmatpush1.msra.mxu0 0.0
        %392 = vmatprep.subr.mxu0 0.0
        %393 = vmatpush1.msra.mxu0 0.0
        %394 = vmatprep.mubr.f32.mxu0 0.0
        %395 = vmatmul.mubr.f32.gmra.mrb[0].mxu0 %v262
        %v396 = vpop.f32.mrb[0].mxu0
        %v397 = vadd.f32 0.0, %v396
        %v398 = vpop.f32.mrb[0].mxu0
        %399 = vdwg.mxu0
        %400 = vmatprep.subr.mxu0 0.0
        %401 = vmatpush1.msra.mxu0 %v282
        %402 = vmatprep.subr.mxu0 0.0
        %403 = vmatpush1.msra.mxu0 %v283
        %404 = vmatprep.subr.mxu0 0.0
        %405 = vmatpush1.msra.mxu0 %v284
        %406 = vmatprep.subr.mxu0 0.0
        %407 = vmatpush1.msra.mxu0 %v285
        %408 = vmatprep.subr.mxu0 0.0
        %409 = vmatpush1.msra.mxu0 %v286
        %410 = vmatprep.subr.mxu0 0.0
        %411 = vmatpush1.msra.mxu0 %v287
        %412 = vmatprep.subr.mxu0 0.0
        %413 = vmatpush1.msra.mxu0 %v288
        %414 = vmatprep.subr.mxu0 0.0
        %415 = vmatpush1.msra.mxu0 %v289
        %416 = vmatprep.subr.mxu0 0.0
        %417 = vmatpush1.msra.mxu0 %v290
        %418 = vmatprep.subr.mxu0 0.0
        %419 = vmatpush1.msra.mxu0 %v291
        %420 = vmatprep.subr.mxu0 0.0
        %421 = vmatpush1.msra.mxu0 %v292
        %422 = vmatprep.subr.mxu0 0.0
        %423 = vmatpush1.msra.mxu0 %v293
        %424 = vmatprep.subr.mxu0 0.0
        %425 = vmatpush1.msra.mxu0 %v294
        %426 = vmatprep.subr.mxu0 0.0
        %427 = vmatpush1.msra.mxu0 %v295
        %428 = vmatprep.subr.mxu0 0.0
        %429 = vmatpush1.msra.mxu0 %v296
        %430 = vmatprep.subr.mxu0 0.0
        %431 = vmatpush1.msra.mxu0 %v297
        %432 = vmatprep.subr.mxu0 0.0
        %433 = vmatpush1.msra.mxu0 0.0
        %434 = vmatprep.subr.mxu0 0.0
        %435 = vmatpush1.msra.mxu0 0.0
        %436 = vmatprep.subr.mxu0 0.0
        %437 = vmatpush1.msra.mxu0 0.0
        %438 = vmatprep.subr.mxu0 0.0
        %439 = vmatpush1.msra.mxu0 0.0
        %440 = vmatprep.subr.mxu0 0.0
        %441 = vmatpush1.msra.mxu0 0.0
        %442 = vmatprep.subr.mxu0 0.0
        %443 = vmatpush1.msra.mxu0 0.0
        %444 = vmatprep.subr.mxu0 0.0
        %445 = vmatpush1.msra.mxu0 0.0
        %446 = vmatprep.subr.mxu0 0.0
        %447 = vmatpush1.msra.mxu0 0.0
        %448 = vmatprep.subr.mxu0 0.0
        %449 = vmatpush1.msra.mxu0 0.0
        %450 = vmatprep.subr.mxu0 0.0
        %451 = vmatpush1.msra.mxu0 0.0
        %452 = vmatprep.subr.mxu0 0.0
        %453 = vmatpush1.msra.mxu0 0.0
        %454 = vmatprep.subr.mxu0 0.0
        %455 = vmatpush1.msra.mxu0 0.0
        %456 = vmatprep.subr.mxu0 0.0
        %457 = vmatpush1.msra.mxu0 0.0
        %458 = vmatprep.subr.mxu0 0.0
        %459 = vmatpush1.msra.mxu0 0.0
        %460 = vmatprep.subr.mxu0 0.0
        %461 = vmatpush1.msra.mxu0 0.0
        %462 = vmatprep.subr.mxu0 0.0
        %463 = vmatpush1.msra.mxu0 0.0
        %464 = vmatprep.mubr.f32.mxu0 0.0
        %465 = vmatmul.mubr.f32.gmra.mrb[0].mxu0 %v263
        %v466 = vpop.f32.mrb[0].mxu0
        %v467 = vadd.f32 0.0, %v466
        %v468 = vpop.f32.mrb[0].mxu0
        %469 = vdwg.mxu0
        %470 = vmatprep.subr.mxu0 0.0
        %471 = vmatpush1.msra.mxu0 %v298
        %472 = vmatprep.subr.mxu0 0.0
        %473 = vmatpush1.msra.mxu0 %v299
        %474 = vmatprep.subr.mxu0 0.0
        %475 = vmatpush1.msra.mxu0 %v300
        %476 = vmatprep.subr.mxu0 0.0
        %477 = vmatpush1.msra.mxu0 %v301
        %478 = vmatprep.subr.mxu0 0.0
        %479 = vmatpush1.msra.mxu0 %v302
        %480 = vmatprep.subr.mxu0 0.0
        %481 = vmatpush1.msra.mxu0 %v303
        %482 = vmatprep.subr.mxu0 0.0
        %483 = vmatpush1.msra.mxu0 %v304
        %484 = vmatprep.subr.mxu0 0.0
        %485 = vmatpush1.msra.mxu0 %v305
        %486 = vmatprep.subr.mxu0 0.0
        %487 = vmatpush1.msra.mxu0 %v306
        %488 = vmatprep.subr.mxu0 0.0
        %489 = vmatpush1.msra.mxu0 %v307
        %490 = vmatprep.subr.mxu0 0.0
        %491 = vmatpush1.msra.mxu0 %v308
        %492 = vmatprep.subr.mxu0 0.0
        %493 = vmatpush1.msra.mxu0 %v309
        %494 = vmatprep.subr.mxu0 0.0
        %495 = vmatpush1.msra.mxu0 %v310
        %496 = vmatprep.subr.mxu0 0.0
        %497 = vmatpush1.msra.mxu0 %v311
        %498 = vmatprep.subr.mxu0 0.0
        %499 = vmatpush1.msra.mxu0 %v312
        %500 = vmatprep.subr.mxu0 0.0
        %501 = vmatpush1.msra.mxu0 %v313
        %502 = vmatprep.subr.mxu0 0.0
        %503 = vmatpush1.msra.mxu0 0.0
        %504 = vmatprep.subr.mxu0 0.0
        %505 = vmatpush1.msra.mxu0 0.0
        %506 = vmatprep.subr.mxu0 0.0
        %507 = vmatpush1.msra.mxu0 0.0
        %508 = vmatprep.subr.mxu0 0.0
        %509 = vmatpush1.msra.mxu0 0.0
        %510 = vmatprep.subr.mxu0 0.0
        %511 = vmatpush1.msra.mxu0 0.0
        %512 = vmatprep.subr.mxu0 0.0
        %513 = vmatpush1.msra.mxu0 0.0
        %514 = vmatprep.subr.mxu0 0.0
        %515 = vmatpush1.msra.mxu0 0.0
        %516 = vmatprep.subr.mxu0 0.0
        %517 = vmatpush1.msra.mxu0 0.0
        %518 = vmatprep.subr.mxu0 0.0
        %519 = vmatpush1.msra.mxu0 0.0
        %520 = vmatprep.subr.mxu0 0.0
        %521 = vmatpush1.msra.mxu0 0.0
        %522 = vmatprep.subr.mxu0 0.0
        %523 = vmatpush1.msra.mxu0 0.0
        %524 = vmatprep.subr.mxu0 0.0
        %525 = vmatpush1.msra.mxu0 0.0
        %526 = vmatprep.subr.mxu0 0.0
        %527 = vmatpush1.msra.mxu0 0.0
        %528 = vmatprep.subr.mxu0 0.0
        %529 = vmatpush1.msra.mxu0 0.0
        %530 = vmatprep.subr.mxu0 0.0
        %531 = vmatpush1.msra.mxu0 0.0
        %532 = vmatprep.subr.mxu0 0.0
        %533 = vmatpush1.msra.mxu0 0.0
        %534 = vmatprep.mubr.f32.mxu0 0.0
        %535 = vmatmul.mubr.f32.gmra.mrb[0].mxu0 %v264
        %v536 = vpop.f32.mrb[0].mxu0
        %v537 = vadd.f32 0.0, %v536
        %v538 = vpop.f32.mrb[0].mxu0
        %539 = vdwg.mxu0
        %540 = vmatprep.subr.mxu0 0.0
        %541 = vmatpush1.msra.mxu0 %v314
        %542 = vmatprep.subr.mxu0 0.0
        %543 = vmatpush1.msra.mxu0 %v315
        %544 = vmatprep.subr.mxu0 0.0
        %545 = vmatpush1.msra.mxu0 %v316
        %546 = vmatprep.subr.mxu0 0.0
        %547 = vmatpush1.msra.mxu0 %v317
        %548 = vmatprep.subr.mxu0 0.0
        %549 = vmatpush1.msra.mxu0 %v318
        %550 = vmatprep.subr.mxu0 0.0
        %551 = vmatpush1.msra.mxu0 %v319
        %552 = vmatprep.subr.mxu0 0.0
        %553 = vmatpush1.msra.mxu0 %v320
        %554 = vmatprep.subr.mxu0 0.0
        %555 = vmatpush1.msra.mxu0 %v321
        %556 = vmatprep.subr.mxu0 0.0
        %557 = vmatpush1.msra.mxu0 %v322
        %558 = vmatprep.subr.mxu0 0.0
        %559 = vmatpush1.msra.mxu0 %v323
        %560 = vmatprep.subr.mxu0 0.0
        %561 = vmatpush1.msra.mxu0 %v324
        %562 = vmatprep.subr.mxu0 0.0
        %563 = vmatpush1.msra.mxu0 %v325
        %564 = vmatprep.subr.mxu0 0.0
        %565 = vmatpush1.msra.mxu0 %v326
        %566 = vmatprep.subr.mxu0 0.0
        %567 = vmatpush1.msra.mxu0 %v327
        %568 = vmatprep.subr.mxu0 0.0
        %569 = vmatpush1.msra.mxu0 %v328
        %570 = vmatprep.subr.mxu0 0.0
        %571 = vmatpush1.msra.mxu0 %v329
        %572 = vmatprep.subr.mxu0 0.0
        %573 = vmatpush1.msra.mxu0 0.0
        %574 = vmatprep.subr.mxu0 0.0
        %575 = vmatpush1.msra.mxu0 0.0
        %576 = vmatprep.subr.mxu0 0.0
        %577 = vmatpush1.msra.mxu0 0.0
        %578 = vmatprep.subr.mxu0 0.0
        %579 = vmatpush1.msra.mxu0 0.0
        %580 = vmatprep.subr.mxu0 0.0
        %581 = vmatpush1.msra.mxu0 0.0
        %582 = vmatprep.subr.mxu0 0.0
        %583 = vmatpush1.msra.mxu0 0.0
        %584 = vmatprep.subr.mxu0 0.0
        %585 = vmatpush1.msra.mxu0 0.0
        %586 = vmatprep.subr.mxu0 0.0
        %587 = vmatpush1.msra.mxu0 0.0
        %588 = vmatprep.subr.mxu0 0.0
        %589 = vmatpush1.msra.mxu0 0.0
        %590 = vmatprep.subr.mxu0 0.0
        %591 = vmatpush1.msra.mxu0 0.0
        %592 = vmatprep.subr.mxu0 0.0
        %593 = vmatpush1.msra.mxu0 0.0
        %594 = vmatprep.subr.mxu0 0.0
        %595 = vmatpush1.msra.mxu0 0.0
        %596 = vmatprep.subr.mxu0 0.0
        %597 = vmatpush1.msra.mxu0 0.0
        %598 = vmatprep.subr.mxu0 0.0
        %599 = vmatpush1.msra.mxu0 0.0
        %600 = vmatprep.subr.mxu0 0.0
        %601 = vmatpush1.msra.mxu0 0.0
        %602 = vmatprep.subr.mxu0 0.0
        %603 = vmatpush1.msra.mxu0 0.0
        %604 = vmatprep.mubr.f32.mxu0 0.0
        %605 = vmatmul.mubr.f32.gmra.mrb[0].mxu0 %v265
        %v606 = vpop.f32.mrb[0].mxu0
        %v607 = vadd.f32 0.0, %v606
        %v608 = vpop.f32.mrb[0].mxu0
        %609 = vdwg.mxu0
        %v610 = vadd.f32 %v258, %v397
        %v611 = vadd.f32 %v259, %v467
        %v612 = vadd.f32 %v260, %v537
        %v613 = vadd.f32 %v261, %v607
        %614 = vst [vmem:[%s245] sm:$0xff] %v610
        %615 = vst [vmem:[%s245 + $0x8] sm:$0xff] %v611
        %616 = vst [vmem:[%s245 + $0x10] sm:$0xff] %v612
        %617 = vst [vmem:[%s245 + $0x18] sm:$0xff] %v613
        %s618 = sand.u32 %s120, 1
        %s619 = scalar_lea.sflag [#allocation4], %s618
        %s620 = sand.u32 %s120, 1
        %s621 = smul.addr %s620, 32
        %s622 = scalar_lea.vmem [#allocation7], %s621
        // Predicated region
        $region41: #{tpu_custom_call.1} parent=27 // pred_check
          %p623 = pneg %p130
        $region42: #{tpu_custom_call.1} parent=27 // pred_check_branch
          %625 = sbr.rel (%p623) target = $region44
        $region43: #{tpu_custom_call.1} parent=27 // pred_region
          %s626 = smul.u32 4, %s28
          %s628 = ssub.s32 512, 512
          %629 = vsyncadd %s619, %s628
          %s630 = sadd.s32 %s30, %s29
          %s631 = sadd.s32 %s630, %s626
          %s632 = smul.addr %s631, 128
          %s633 = scalar_lea.hbm %s2, %s632
          %s634 = sshll.u32 %s622, 4
          %s635 = int_to_ptr.vmem [resolvable:$true] %s634
          %640 = dma.vmem_to_hbm [thread:$0]  %s635, 512, %s633, %s619, 128, 128, 8
        $region44: #{tpu_custom_call.1} parent=27 // pred_fallthru
          _
      $region28: #{tpu_custom_call.1} parent=5 // pred_fallthru
        _
      %p641 = scmp.le.s32.totalorder 2, %s17
      // Predicated region
      $region45: #{tpu_custom_call.1} parent=5 // pred_check
        %p642 = pneg %p641
      $region46: #{tpu_custom_call.1} parent=5 // pred_check_branch
        %644 = sbr.rel (%p642) target = $region48
      $region47: #{tpu_custom_call.1} parent=5 // pred_region
        %s645 = ssub.s32 %s17, 2
        // Predicated region
        $region49: #{tpu_custom_call.1} parent=47 // pred_check
          %p646 = pneg %p136
        $region50: #{tpu_custom_call.1} parent=47 // pred_check_branch
          %648 = sbr.rel (%p646) target = $region52
        $region51: #{tpu_custom_call.1} parent=47 // pred_region
          %s649 = sand.u32 %s121, 1
          %s650 = scalar_lea.sflag [#allocation4], %s649
          %s651 = sand.u32 %s121, 1
          %s652 = smul.addr %s651, 32
          %s653 = scalar_lea.vmem [#allocation7], %s652
          %654 = dma.done %s650, 512
        $region52: #{tpu_custom_call.1} parent=47 // pred_fallthru
          _
      $region48: #{tpu_custom_call.1} parent=5 // pred_fallthru
        _
    $region6: #{tpu_custom_call.1} parent=1 // loop_footer
      %s21 = sadd.s32 1, %s17
    $region7: #{tpu_custom_call.1} parent=1 // loop_footer_branch
      %16 = sbr.rel target = $region3
    $region8: #{tpu_custom_call.1} parent=1 // loop_exit
      _
    %655 = vsyncpa [#allocation3], 1
    %s656 = scalar_lea.sflag [#allocation3], 1
    %657 = vsyncpa %s656, 1
    %658 = vsyncpa [#allocation6], 1
    %s659 = scalar_lea.sflag [#allocation6], 1
    %660 = vsyncpa %s659, 1
    %661 = vsyncpa [#allocation4], 1
    %s662 = scalar_lea.sflag [#allocation4], 1
    %663 = vsyncpa %s662, 1

</llo_original>
